<compile_context>
chip_gen: v7x
topology: tpu7x:2x2x1
jax: 0.10.0
libtpu: 0.0.40
codegen_flags: <defaults>
</compile_context>

<pallas_src>
import functools

import jax
import jax.numpy as jnp
from jax.experimental import pallas as pl
from jax.experimental.pallas import tpu as pltpu


def _add_pos_kernel(x_ref, pos_ref, o_ref):
    # (TR, C) tiles; plain VPU add, fully hidden under the DMA pipeline.
    o_ref[...] = (x_ref[...] + pos_ref[...]).astype(o_ref.dtype)


def _split_features(S, E):
    """Return (R, C, pad_e): (S, E+pad_e) flattens row-major to (R, C)."""
    F = S * E
    if F % 128 == 0:
        for cand in (2048, 1024, 512, 256, 128):
            if F % cand == 0:
                return F // cand, cand, 0
    if E < 128:
        # Lane-sparse shape: pad E up to 128 so every store is an unmasked
        # full-lane vst (masked partial stores dominate otherwise).
        E_pad = 128
        Fp = S * E_pad
        for cand in (2048, 1024, 512, 256, 128):
            if Fp % cand == 0:
                return Fp // cand, cand, E_pad - E
    # TODO(synk): E >= 128 but S*E % 128 != 0 -> keep full-E last block dim
    # (legal, mostly lane-dense); pad to next multiple of 128 if the masked
    # tail stores ever show up in profiles.
    return S, E, 0


def _pick_row_tile(R, C, itemsize, target_bytes):
    """Largest packing-aligned row count whose (TR, C) tile fits target_bytes."""
    sub = 8 * max(1, 4 // itemsize)        # f32 -> 8, bf16 -> 16, int8/fp8 -> 32
    rows = max(target_bytes // (C * itemsize), 1)
    tr = (rows // sub) * sub
    if tr == 0:
        tr = sub                            # at least one packed row-group
    return min(tr, R)                       # TR == R (full dim) is always legal


@functools.partial(jax.jit, static_argnames=("target_block_bytes", "donate_x"))
def learned_position_encoding(x, position_embeddings, *,
                              target_block_bytes=4 * 1024 * 1024,
                              donate_x=False):
    """x: (B, S, E); position_embeddings: (max_seq_len, E). Returns x + pos[:S]."""
    B, S, E = x.shape
    # Static slice + cast to x.dtype (halves pos DMA when table is wider).
    pos = position_embeddings[:S, :].astype(x.dtype)

    itemsize = jnp.dtype(x.dtype).itemsize
    R, C, pad_e = _split_features(S, E)

    if pad_e:
        x_in = jnp.pad(x, ((0, 0), (0, 0), (0, pad_e)))
        pos = jnp.pad(pos, ((0, 0), (0, pad_e)))
        E_pad = E + pad_e
    else:
        x_in = x
        E_pad = E

    x_r = x_in.reshape(B, R, C)              # contiguous, free reshape
    pos_r = pos.reshape(R, C)

    TR = _pick_row_tile(R, C, itemsize, target_block_bytes)
    # Row tile OUTER, batch INNER: pos block index is constant across the
    # inner batch loop, so Pallas keeps the pos tile resident (no re-DMA).
    grid = (pl.cdiv(R, TR), B)

    tile_bytes = TR * C * itemsize
    # x, pos, out each double-buffered (6 tiles) + headroom; never below the
    # 16 MiB v5e scoped default, never above 48 MiB (v7x has 64 MiB / TC).
    vmem_limit = min(max(6 * tile_bytes + (4 << 20), 16 << 20), 48 << 20)

    extra = {}
    if donate_x:
        # Only useful when the caller actually donates x; avoids an extra
        # B*S*E output allocation (HBM traffic is unchanged).
        extra["input_output_aliases"] = {0: 0}

    out_r = pl.pallas_call(
        _add_pos_kernel,
        out_shape=jax.ShapeDtypeStruct((B, R, C), x.dtype),
        grid=grid,
        in_specs=[
            # batch dim squeezed out of the kernel view
            pl.BlockSpec((None, TR, C), lambda rt, b: (b, rt, 0)),
            pl.BlockSpec((TR, C), lambda rt, b: (rt, 0)),
        ],
        out_specs=pl.BlockSpec((None, TR, C), lambda rt, b: (b, rt, 0)),
        compiler_params=pltpu.CompilerParams(
            # Megacore split biased onto the row-tile axis; batch stays a
            # sequential inner loop so the pos-residency trick holds.
            dimension_semantics=("parallel", "arbitrary"),
            vmem_limit_bytes=vmem_limit,
        ),
        cost_estimate=pl.CostEstimate(
            flops=B * R * C,
            transcendentals=0,
            bytes_accessed=(2 * B * R * C + R * C) * itemsize,
        ),
        **extra,
    )(x_r, pos_r)

    out = out_r.reshape(B, S, E_pad)
    if pad_e:
        out = out[:, :, :E]
    return out


def init_params(key, max_seq_len, embedding_dim, dtype=jnp.float32):
    # nn.init.uniform_(position_embeddings, -0.1, 0.1)
    return jax.random.uniform(
        key, (max_seq_len, embedding_dim), dtype=dtype, minval=-0.1, maxval=0.1
    )


if __name__ == "__main__":
    key = jax.random.PRNGKey(0)
    k_pos, k_x, k_x2 = jax.random.split(key, 3)

    max_seq_len = 16
    embedding_dim = 32
    B, S = 2, 8

    position_embeddings = init_params(k_pos, max_seq_len, embedding_dim)
    x = jax.random.normal(k_x, (B, S, embedding_dim), dtype=jnp.float32)

    out = learned_position_encoding(x, position_embeddings)
    out = jax.block_until_ready(out)

    ref = x + position_embeddings[:S, :][None, :, :]
    assert out.shape == (B, S, embedding_dim)
    assert jnp.allclose(out, ref, atol=1e-6), "mismatch vs reference (aligned E)"

    # Exercise the lane-sparse (padded-E) path: E=20 < 128, S*E not % 128.
    E2 = 20
    pos2 = init_params(k_pos, max_seq_len, E2)
    x2 = jax.random.normal(k_x2, (B, S, E2), dtype=jnp.float32)
    out2 = jax.block_until_ready(learned_position_encoding(x2, pos2))
    ref2 = x2 + pos2[:S, :][None, :, :]
    assert out2.shape == (B, S, E2)
    assert jnp.allclose(out2, ref2, atol=1e-6), "mismatch vs reference (padded E)"

    print("KERNEL_OK")
</pallas_src>

<mosaic_0001>
module attributes {stable_mosaic.version = 11 : i64} {
  func.func @_add_pos_kernel(%arg0: i32, %arg1: i32, %arg2: memref<1x1x256xf32, #tpu.memory_space<vmem>>, %arg3: memref<1x256xf32, #tpu.memory_space<vmem>>, %arg4: memref<1x1x256xf32, #tpu.memory_space<vmem>>) attributes {dimension_semantics = [#tpu.dimension_semantics<parallel>, #tpu.dimension_semantics<arbitrary>], iteration_bounds = array<i64: 1, 2>, scalar_prefetch = 0 : i64, scratch_operands = 0 : i64, tpu.core_type = #tpu.core_type<tc>, window_params = [{transform_indices = @transform_0, window_bounds = array<i64: 1, 1, 256>}, {transform_indices = @transform_1, window_bounds = array<i64: 1, 256>}, {transform_indices = @transform_2, window_bounds = array<i64: 1, 1, 256>}]} {
    %c0 = arith.constant 0 : index
    %c0_0 = arith.constant 0 : index
    %c0_1 = arith.constant 0 : index
    %0 = vector.load %arg2[%c0, %c0_0, %c0_1] : memref<1x1x256xf32, #tpu.memory_space<vmem>>, vector<1x1x256xf32>
    %1 = vector.shape_cast %0 : vector<1x1x256xf32> to vector<1x256xf32>
    %c0_2 = arith.constant 0 : index
    %c0_3 = arith.constant 0 : index
    %2 = vector.load %arg3[%c0_2, %c0_3] : memref<1x256xf32, #tpu.memory_space<vmem>>, vector<1x256xf32>
    %3 = arith.addf %1, %2 : vector<1x256xf32>
    %c0_4 = arith.constant 0 : index
    %c0_5 = arith.constant 0 : index
    %c0_6 = arith.constant 0 : index
    %4 = vector.load %arg4[%c0_4, %c0_5, %c0_6] : memref<1x1x256xf32, #tpu.memory_space<vmem>>, vector<1x1x256xf32>
    %5 = vector.shape_cast %4 : vector<1x1x256xf32> to vector<1x256xf32>
    %6 = vector.shape_cast %3 : vector<1x256xf32> to vector<1x1x256xf32>
    tpu.vector_store %arg4[%c0_4, %c0_5, %c0_6], %6 {strides = array<i32>} : memref<1x1x256xf32, #tpu.memory_space<vmem>>, vector<1x1x256xf32>,
    return
  }
  func.func @transform_0(%arg0: i32, %arg1: i32) -> (i32, i32, i32) {
    %c0_i32 = arith.constant 0 : i32
    %c0_i32_0 = arith.constant 0 : i32
    return %arg1, %arg0, %c0_i32 : i32, i32, i32
  }
  func.func @transform_1(%arg0: i32, %arg1: i32) -> (i32, i32) {
    %c0_i32 = arith.constant 0 : i32
    %c0_i32_0 = arith.constant 0 : i32
    return %arg0, %c0_i32 : i32, i32
  }
  func.func @transform_2(%arg0: i32, %arg1: i32) -> (i32, i32, i32) {
    %c0_i32 = arith.constant 0 : i32
    %c0_i32_0 = arith.constant 0 : i32
    return %arg1, %arg0, %c0_i32 : i32, i32, i32
  }
}

</mosaic_0001>

<llo_original>
// kernel: learned_position_encoding.1
$region0: #{learned_position_encoding.1}
  #allocation0 [shape = 'u32[]', space=smem, size = 0x4, offset = 0x4, fixed_abs, tag = 'smem constant byte address 0x4 - core index']
  #allocation1 [shape = 'u32[144,128]{1,0:T(1,128)}', space=vmem, size = 0x12000, scoped, tag = 'internal scratch']
  %s0 = inlined_call_operand.vmem [shape: f32[2,1,256], index: 0, kind: input, shape index: {}]
  %s1 = inlined_call_operand.vmem [shape: f32[1,256], index: 1, kind: input, shape index: {}]
  %s2 = inlined_call_operand.vmem [shape: f32[2,1,256], index: 2, kind: output, shape index: {}]
  %s3 = sld [smem:[#allocation0]]
  $region41: #{learned_position_encoding.1} parent=0
    _
  %s5 = ssub.s32 1, %s3
  %s6 = scalar_select 0, %s5, %s3
  loop: start=0, step=1, limit=4
  $region2: #{learned_position_encoding.1} parent=0 // loop_pre_header
    _
  $region3: #{learned_position_encoding.1} parent=0 // loop_header
    %s8 = sphi 0, %s12
    %p9 = scmp.ge.s32.totalorder %s8, 4
    %s15 = sphi 0, %s27
    %s16 = sphi 0, %s23
    %s17 = sphi 0, %s15
    %s18 = sphi 0, %s16
    %s19 = sphi 0, %s17
    %s20 = sphi 0, %s18
    %s32 = sphi 0, %s34
    %s35 = sphi 0, %s32
    %s36 = sphi 0, %s35
    %s52 = sphi 0, %s36
    %s58 = sphi 0, %s60
    %s61 = sphi 0, %s58
    %s62 = sphi 0, %s61
    %s78 = sphi 0, %s62
    %s86 = sphi 0, %s88
    %s89 = sphi 0, %s86
    %s90 = sphi 0, %s89
    %s106 = sphi 0, %s90
  $region4: #{learned_position_encoding.1} parent=0 // loop_header_branch
    %11 = sbr.rel (%p9) target = $region8
  $region5: #{learned_position_encoding.1} parent=0 // loop_body
    %s13 = ssub.s32 %s8, 1
    %s14 = ssub.s32 %s8, 2
    %s21 = sadd.s32 1, %s16
    %p22 = scmp.ge.s32.totalorder %s21, 2
    %s23 = scalar_select %p22, 0, %s21
    %s24 = sadd.s32 1, %s15
    %s25 = scalar_select %p22, %s24, %s15
    %p26 = scmp.ge.s32.totalorder %s25, 1
    %s27 = scalar_select %p26, 0, %s25
    %s28 = ssub.s32 %s16, %s23
    %s29 = ssub.s32 %s15, %s27
    %s30 = sor.u32 %s28, %s29
    %p31 = scmp.eq.s32.totalorder %s30, 0
    %s33 = sadd.s32 %s32, 1
    %s34 = scalar_select %p31, %s32, %s33
    %p37 = pneg %p31
    %p38 = scmp.eq.s32.totalorder %s8, 1
    %p39 = por %p37, %p38
    %p40 = scmp.ne.s32.totalorder %s32, %s35
    %p41 = scmp.eq.s32.totalorder %s8, 0
    %p42 = por %p40, %p41
    %p43 = scmp.ne.s32.totalorder %s32, %s35
    %p44 = scmp.eq.s32.totalorder %s13, 1
    %p45 = por %p43, %p44
    %p46 = scmp.ne.s32.totalorder %s35, %s36
    %p47 = scmp.eq.s32.totalorder %s13, 0
    %p48 = por %p46, %p47
    %p49 = scmp.ne.s32.totalorder %s35, %s36
    %p50 = scmp.eq.s32.totalorder %s14, 1
    %p51 = por %p49, %p50
    %p53 = scmp.ne.s32.totalorder %s36, %s52
    %p54 = scmp.eq.s32.totalorder %s14, 0
    %p55 = por %p53, %p54
    %s56 = ssub.s32 %s15, %s27
    %p57 = scmp.eq.s32.totalorder %s56, 0
    %s59 = sadd.s32 %s58, 1
    %s60 = scalar_select %p57, %s58, %s59
    %p63 = pneg %p57
    %p64 = scmp.eq.s32.totalorder %s8, 1
    %p65 = por %p63, %p64
    %p66 = scmp.ne.s32.totalorder %s58, %s61
    %p67 = scmp.eq.s32.totalorder %s8, 0
    %p68 = por %p66, %p67
    %p69 = scmp.ne.s32.totalorder %s58, %s61
    %p70 = scmp.eq.s32.totalorder %s13, 1
    %p71 = por %p69, %p70
    %p72 = scmp.ne.s32.totalorder %s61, %s62
    %p73 = scmp.eq.s32.totalorder %s13, 0
    %p74 = por %p72, %p73
    %p75 = scmp.ne.s32.totalorder %s61, %s62
    %p76 = scmp.eq.s32.totalorder %s14, 1
    %p77 = por %p75, %p76
    %p79 = scmp.ne.s32.totalorder %s62, %s78
    %p80 = scmp.eq.s32.totalorder %s14, 0
    %p81 = por %p79, %p80
    %s82 = ssub.s32 %s16, %s23
    %s83 = ssub.s32 %s15, %s27
    %s84 = sor.u32 %s82, %s83
    %p85 = scmp.eq.s32.totalorder %s84, 0
    %s87 = sadd.s32 %s86, 1
    %s88 = scalar_select %p85, %s86, %s87
    %p91 = pneg %p85
    %p92 = scmp.eq.s32.totalorder %s8, 1
    %p93 = por %p91, %p92
    %p94 = scmp.ne.s32.totalorder %s86, %s89
    %p95 = scmp.eq.s32.totalorder %s8, 0
    %p96 = por %p94, %p95
    %p97 = scmp.ne.s32.totalorder %s86, %s89
    %p98 = scmp.eq.s32.totalorder %s13, 1
    %p99 = por %p97, %p98
    %p100 = scmp.ne.s32.totalorder %s89, %s90
    %p101 = scmp.eq.s32.totalorder %s13, 0
    %p102 = por %p100, %p101
    %p103 = scmp.ne.s32.totalorder %s89, %s90
    %p104 = scmp.eq.s32.totalorder %s14, 1
    %p105 = por %p103, %p104
    %p107 = scmp.ne.s32.totalorder %s90, %s106
    %p108 = scmp.eq.s32.totalorder %s14, 0
    %p109 = por %p107, %p108
    %p110 = scmp.le.s32.totalorder 1, %s8
    %p111 = scmp.lt.s32.totalorder %s8, 3
    %p112 = pnand %p110, %p111
    %p113 = pneg %p112
    // Predicated region
    $region9: #{learned_position_encoding.1} parent=5 // pred_check
      _
    $region10: #{learned_position_encoding.1} parent=5 // pred_check_branch
      %115 = sbr.rel (%p112) target = $region12
    $region11: #{learned_position_encoding.1} parent=5 // pred_region
      %s116 = ssub.s32 %s8, 1
      // Predicated region
      $region13: #{learned_position_encoding.1} parent=11 // pred_check
        %p117 = pneg %p74
      $region14: #{learned_position_encoding.1} parent=11 // pred_check_branch
        %119 = sbr.rel (%p117) target = $region16
      $region15: #{learned_position_encoding.1} parent=11 // pred_region
        %p120 = scmp.lt.s32.totalorder %s17, 0
        %s121 = scalar_select %p120, %s17, 0
        %s122 = smul.addr %s121, 2
        %s123 = scalar_lea.vmem %s1, %s122
      $region16: #{learned_position_encoding.1} parent=11 // pred_fallthru
        _
    $region12: #{learned_position_encoding.1} parent=5 // pred_fallthru
      _
    %p124 = scmp.lt.s32.totalorder %s8, 2
    // Predicated region
    $region17: #{learned_position_encoding.1} parent=5 // pred_check
      %p125 = pneg %p124
    $region18: #{learned_position_encoding.1} parent=5 // pred_check_branch
      %127 = sbr.rel (%p125) target = $region20
    $region19: #{learned_position_encoding.1} parent=5 // pred_region
      // Predicated region
      $region21: #{learned_position_encoding.1} parent=19 // pred_check
        %p128 = pneg %p42
      $region22: #{learned_position_encoding.1} parent=19 // pred_check_branch
        %130 = sbr.rel (%p128) target = $region24
      $region23: #{learned_position_encoding.1} parent=19 // pred_region
        %p131 = scmp.lt.s32.totalorder %s16, 1
        %s132 = scalar_select %p131, %s16, 1
        %p133 = scmp.lt.s32.totalorder %s15, 0
        %s134 = scalar_select %p133, %s15, 0
        %s135 = smul.addr %s134, 2
        %s136 = smul.addr %s132, 2
        %s137 = sadd.s32 %s135, %s136
        %s138 = scalar_lea.vmem %s0, %s137
      $region24: #{learned_position_encoding.1} parent=19 // pred_fallthru
        _
    $region20: #{learned_position_encoding.1} parent=5 // pred_fallthru
      _
    %p139 = scmp.le.s32.totalorder 1, %s8
    %p140 = scmp.lt.s32.totalorder %s8, 3
    %p141 = pnand %p139, %p140
    %p142 = pneg %p141
    // Predicated region
    $region25: #{learned_position_encoding.1} parent=5 // pred_check
      _
    $region26: #{learned_position_encoding.1} parent=5 // pred_check_branch
      %144 = sbr.rel (%p141) target = $region28
    $region27: #{learned_position_encoding.1} parent=5 // pred_region
      %s145 = ssub.s32 %s8, 1
      %p146 = scmp.lt.s32.totalorder %s18, 1
      %s147 = scalar_select %p146, %s18, 1
      %p148 = scmp.lt.s32.totalorder %s17, 0
      %s149 = scalar_select %p148, %s17, 0
      %s150 = smul.addr %s149, 2
      %s151 = smul.addr %s147, 2
      %s152 = sadd.s32 %s150, %s151
      %s153 = scalar_lea.vmem %s0, %s152
      %p154 = pneg %p48
      %p155 = pneg %p45
      %p156 = scmp.lt.s32.totalorder %s17, 0
      %s157 = scalar_select %p156, %s17, 0
      %s158 = smul.addr %s157, 2
      %s159 = scalar_lea.vmem %s1, %s158
      %p160 = pneg %p74
      %p161 = pneg %p71
      %p162 = pneg %p102
      %p163 = pneg %p99
      %p164 = scmp.lt.s32.totalorder %s18, 1
      %s165 = scalar_select %p164, %s18, 1
      %p166 = scmp.lt.s32.totalorder %s17, 0
      %s167 = scalar_select %p166, %s17, 0
      %s168 = smul.addr %s167, 2
      %s169 = smul.addr %s165, 2
      %s170 = sadd.s32 %s168, %s169
      %s171 = scalar_lea.vmem %s2, %s170
      %p172 = scmp.lt.s32.totalorder %s18, 1
      %s173 = scalar_select %p172, %s18, 1
      %p174 = scmp.lt.s32.totalorder %s17, 0
      %s175 = scalar_select %p174, %s17, 0
      %s176 = smul.addr %s175, 2
      %s177 = smul.addr %s173, 2
      %s178 = sadd.s32 %s176, %s177
      %s179 = scalar_lea.vmem %s0, %s178
      %p180 = scmp.lt.s32.totalorder %s17, 0
      %s181 = scalar_select %p180, %s17, 0
      %s182 = smul.addr %s181, 2
      %s183 = scalar_lea.vmem %s1, %s182
      %p184 = scmp.lt.s32.totalorder %s18, 1
      %s185 = scalar_select %p184, %s18, 1
      %p186 = scmp.lt.s32.totalorder %s17, 0
      %s187 = scalar_select %p186, %s17, 0
      %s188 = smul.addr %s187, 2
      %s189 = smul.addr %s185, 2
      %s190 = sadd.s32 %s188, %s189
      %s191 = scalar_lea.vmem %s2, %s190
      %v192 = vld [vmem:[%s179] sm:$0x3]
      %v193 = vld [vmem:[%s183] sm:$0x3]
      %v194 = vadd.f32 %v192, %v193
      %v195 = vlaneseq
      %vm196 = vcmp.ge.s32.totalorder %v195, 0
      %vm197 = vcmp.lt.s32.totalorder %v195, 256
      %vm198 = vmand %vm196, %vm197
      %199 = vst.msk [vmem:[%s191] sm:$0x3] %vm198, %v194
      %p200 = scmp.lt.s32.totalorder %s18, 1
      %s201 = scalar_select %p200, %s18, 1
      %p202 = scmp.lt.s32.totalorder %s17, 0
      %s203 = scalar_select %p202, %s17, 0
      %s204 = smul.addr %s203, 2
      %s205 = smul.addr %s201, 2
      %s206 = sadd.s32 %s204, %s205
      %s207 = scalar_lea.vmem %s2, %s206
      // Predicated region
      $region29: #{learned_position_encoding.1} parent=27 // pred_check
        %p208 = pneg %p99
      $region30: #{learned_position_encoding.1} parent=27 // pred_check_branch
        %210 = sbr.rel (%p208) target = $region32
      $region31: #{learned_position_encoding.1} parent=27 // pred_region
        _
      $region32: #{learned_position_encoding.1} parent=27 // pred_fallthru
        _
    $region28: #{learned_position_encoding.1} parent=5 // pred_fallthru
      _
    %p211 = scmp.le.s32.totalorder 2, %s8
    // Predicated region
    $region33: #{learned_position_encoding.1} parent=5 // pred_check
      %p212 = pneg %p211
    $region34: #{learned_position_encoding.1} parent=5 // pred_check_branch
      %214 = sbr.rel (%p212) target = $region36
    $region35: #{learned_position_encoding.1} parent=5 // pred_region
      %s215 = ssub.s32 %s8, 2
      // Predicated region
      $region37: #{learned_position_encoding.1} parent=35 // pred_check
        %p216 = pneg %p105
      $region38: #{learned_position_encoding.1} parent=35 // pred_check_branch
        %218 = sbr.rel (%p216) target = $region40
      $region39: #{learned_position_encoding.1} parent=35 // pred_region
        %p219 = scmp.lt.s32.totalorder %s20, 1
        %s220 = scalar_select %p219, %s20, 1
        %p221 = scmp.lt.s32.totalorder %s19, 0
        %s222 = scalar_select %p221, %s19, 0
        %s223 = smul.addr %s222, 2
        %s224 = smul.addr %s220, 2
        %s225 = sadd.s32 %s223, %s224
        %s226 = scalar_lea.vmem %s2, %s225
      $region40: #{learned_position_encoding.1} parent=35 // pred_fallthru
        _
    $region36: #{learned_position_encoding.1} parent=5 // pred_fallthru
      _
  $region6: #{learned_position_encoding.1} parent=0 // loop_footer
    %s12 = sadd.s32 1, %s8
  $region7: #{learned_position_encoding.1} parent=0 // loop_footer_branch
    %7 = sbr.rel target = $region3
  $region8: #{learned_position_encoding.1} parent=0 // loop_exit
    _

</llo_original>
